<compile_context>
chip_gen: v6e
topology: v6e:2x2x1
jax: 0.10.0
libtpu: 0.0.40
codegen_flags: <defaults>
</compile_context>

<pallas_src>
import jax
import jax.numpy as jnp
from jax.experimental import pallas as pl
from jax.experimental.pallas import tpu as pltpu

# Small shapes consistent with the module (224x224x3 -> 512 -> 300 in the
# original; scaled down but same structure, kept lane-aligned).
NUM_CLIPS = 4  # batch of clips processed in one pallas_call
F = 8          # number of frames in a clip
C = 4          # image channels
H = W = 16     # spatial resolution after the img_transform resize
HW = H * W
CHW = C * HW   # 1024
D_IN = 128     # stand-in for resnet18 fc.in_features (512) -- lane-aligned
D_FEAT = 128   # stand-in for feature_dim (300) -- lane-aligned


def video_feat_kernel(frames_ref, wg_ref, biases_ref, wp_ref, out_ref):
    # --- VisualFeatureExtractor.forward(frame) for all F frames of one clip ---
    # TODO(synk): the full pretrained ResNet18 conv stack is not reproduced; it
    # is replaced by a deterministic GAP + Linear + ReLU backbone stand-in
    # (GAP already folded into wg by the wrapper).
    hidden = jnp.maximum(
        jnp.dot(frames_ref[...], wg_ref[...],
                preferred_element_type=jnp.float32)
        + biases_ref[0:1, :], 0.0)                               # (F, D_IN)
    emb = jnp.dot(hidden, wp_ref[...],
                  preferred_element_type=jnp.float32)            # (F, D_FEAT)

    # torch.max(..., dim=0)[0] over frames; projector bias added after the max
    # (exact: per-column constant shift commutes with max).
    scene = jnp.max(emb, axis=0, keepdims=True) + biases_ref[1:2, :]  # (1, D_FEAT)

    # --- FaceExtractor.extract_faces_embedding ---
    # TODO(synk): MTCNN face detection has no Pallas equivalent; the single
    # detected "face" is the full frame (area weight 1.0), so the face
    # embedding equals the scene embedding. torch.cat((scene, face), dim=0) is
    # realized as a cheap sublane broadcast into a (2, D_FEAT) row block.
    out_ref[...] = jnp.broadcast_to(scene, (2, D_FEAT))


def video_feature_extractor_batched(clips, wg, biases, wp):
    """clips: [N, F, C, H, W] float32 (NCHW). Returns [N, 2 * D_FEAT] float32."""
    N, Fn, Cn, Hn, Wn = clips.shape
    chw = Cn * Hn * Wn
    clips_flat = clips.reshape(N, Fn, chw)   # glue reshape (plain JAX)
    out = pl.pallas_call(
        video_feat_kernel,
        out_shape=jax.ShapeDtypeStruct((N, 2, D_FEAT), jnp.float32),
        grid=(N,),
        in_specs=[
            # One clip per grid step: (F, C*HW) = (8, 1024), lane-dense, no
            # sublane padding; double-buffered across the parallel clip axis.
            pl.BlockSpec((None, Fn, chw), lambda i: (i, 0, 0)),
            # Fused GAP+backbone weight, resident across all clips.
            pl.BlockSpec((chw, D_IN), lambda i: (0, 0)),
            # Packed biases: row 0 = backbone bias, row 1 = projector bias.
            pl.BlockSpec((2, D_FEAT), lambda i: (0, 0)),
            # Projector weight.
            pl.BlockSpec((D_IN, D_FEAT), lambda i: (0, 0)),
        ],
        # (2, 128) row block per clip: last dim is a multiple of 128 -> unmasked
        # lane-dense stores.
        out_specs=pl.BlockSpec((None, 2, D_FEAT), lambda i: (i, 0, 0)),
        compiler_params=pltpu.CompilerParams(
            dimension_semantics=("parallel",)),
    )(clips_flat, wg, biases, wp)
    return out.reshape(N, 2 * D_FEAT)


def video_feature_extractor(frames, wg, biases, wp):
    """Module forward(): one clip [F, C, H, W] -> [2 * D_FEAT]."""
    return video_feature_extractor_batched(frames[None], wg, biases, wp)[0]


def fuse_params(wb, bb, wp, bp, hw):
    """Fold the GAP into the backbone weight and pack the two biases."""
    wg = jnp.repeat(wb, hw, axis=0) / float(hw)      # (C*HW, D_IN)
    biases = jnp.concatenate([bb, bp], axis=0)       # (2, D_FEAT), D_IN == D_FEAT
    return wg, biases


def reference(clips, wb, bb, wp, bp):
    N = clips.shape[0]
    gap = jnp.mean(clips.reshape(N, F, C, HW), axis=3)        # (N, F, C)
    hidden = jnp.maximum(gap @ wb + bb, 0.0)                  # (N, F, D_IN)
    emb = hidden @ wp + bp                                    # (N, F, D_FEAT)
    scene = jnp.max(emb, axis=1)                              # (N, D_FEAT)
    face = jnp.max(emb, axis=1)                               # (N, D_FEAT)
    return jnp.concatenate([scene, face], axis=-1)            # (N, 2*D_FEAT)


if __name__ == "__main__":
    key = jax.random.PRNGKey(0)
    k1, k2, k3, k4, k5 = jax.random.split(key, 5)
    clips = jax.random.normal(k1, (NUM_CLIPS, F, C, H, W), dtype=jnp.float32)
    # Deterministic synthetic parameters (no checkpoint load).
    wb = jax.random.normal(k2, (C, D_IN), dtype=jnp.float32) * 0.1
    bb = jax.random.normal(k3, (1, D_IN), dtype=jnp.float32) * 0.1
    wp = jax.random.normal(k4, (D_IN, D_FEAT), dtype=jnp.float32) * 0.1
    bp = jax.random.normal(k5, (1, D_FEAT), dtype=jnp.float32) * 0.1

    wg, biases = fuse_params(wb, bb, wp, bp, HW)

    # Batched path (all clips in one pallas_call, parallel grid axis).
    out = video_feature_extractor_batched(clips, wg, biases, wp)
    jax.block_until_ready(out)
    ref = reference(clips, wb, bb, wp, bp)
    assert out.shape == (NUM_CLIPS, 2 * D_FEAT)
    assert jnp.allclose(out, ref, atol=1e-4, rtol=1e-4)

    # Single-clip forward (the module's actual forward signature).
    single = video_feature_extractor(clips[0], wg, biases, wp)
    jax.block_until_ready(single)
    assert single.shape == (2 * D_FEAT,)
    assert jnp.allclose(single, ref[0], atol=1e-4, rtol=1e-4)

    print("KERNEL_OK")
</pallas_src>

<mosaic_0001>
module attributes {stable_mosaic.version = 11 : i64} {
  func.func @video_feat_kernel(%arg0: i32, %arg1: memref<1x8x1024xf32, #tpu.memory_space<vmem>>, %arg2: memref<1024x128xf32, #tpu.memory_space<vmem>>, %arg3: memref<2x128xf32, #tpu.memory_space<vmem>>, %arg4: memref<128x128xf32, #tpu.memory_space<vmem>>, %arg5: memref<1x2x128xf32, #tpu.memory_space<vmem>>) attributes {dimension_semantics = [#tpu.dimension_semantics<parallel>], iteration_bounds = array<i64: 4>, scalar_prefetch = 0 : i64, scratch_operands = 0 : i64, tpu.core_type = #tpu.core_type<tc>, window_params = [{transform_indices = @transform_0, window_bounds = array<i64: 1, 8, 1024>}, {pipeline_mode = #tpu.pipeline_mode<synchronous>, transform_indices = @transform_1, window_bounds = array<i64: 1024, 128>}, {pipeline_mode = #tpu.pipeline_mode<synchronous>, transform_indices = @transform_2, window_bounds = array<i64: 2, 128>}, {pipeline_mode = #tpu.pipeline_mode<synchronous>, transform_indices = @transform_3, window_bounds = array<i64: 128, 128>}, {transform_indices = @transform_4, window_bounds = array<i64: 1, 2, 128>}]} {
    %c0 = arith.constant 0 : index
    %c0_0 = arith.constant 0 : index
    %c0_1 = arith.constant 0 : index
    %0 = vector.load %arg1[%c0, %c0_0, %c0_1] : memref<1x8x1024xf32, #tpu.memory_space<vmem>>, vector<1x8x1024xf32>
    %1 = vector.shape_cast %0 : vector<1x8x1024xf32> to vector<8x1024xf32>
    %c0_2 = arith.constant 0 : index
    %c0_3 = arith.constant 0 : index
    %2 = vector.load %arg2[%c0_2, %c0_3] : memref<1024x128xf32, #tpu.memory_space<vmem>>, vector<1024x128xf32>
    %cst = arith.constant dense<0.000000e+00> : vector<8x128xf32>
    %3 = tpu.matmul %1, %2, %cst {dimension_numbers = #tpu.dot_dimension_numbers<[1], [0], [0], [1], [0, 0, 1, 1], [], []>} : vector<8x1024xf32>, vector<1024x128xf32>, vector<8x128xf32> -> vector<8x128xf32>
    %c0_4 = arith.constant 0 : index
    %c0_5 = arith.constant 0 : index
    %4 = vector.load %arg3[%c0_4, %c0_5] : memref<2x128xf32, #tpu.memory_space<vmem>>, vector<1x128xf32>
    %5 = vector.broadcast %4 : vector<1x128xf32> to vector<8x128xf32>
    %6 = arith.addf %3, %5 : vector<8x128xf32>
    %cst_6 = arith.constant 0.000000e+00 : f32
    %7 = vector.broadcast %cst_6 : f32 to vector<8x128xf32>
    %8 = arith.maximumf %6, %7 : vector<8x128xf32>
    %c0_7 = arith.constant 0 : index
    %c0_8 = arith.constant 0 : index
    %9 = vector.load %arg4[%c0_7, %c0_8] : memref<128x128xf32, #tpu.memory_space<vmem>>, vector<128x128xf32>
    %cst_9 = arith.constant dense<0.000000e+00> : vector<8x128xf32>
    %10 = tpu.matmul %8, %9, %cst_9 {dimension_numbers = #tpu.dot_dimension_numbers<[1], [0], [0], [1], [0, 0, 1, 1], [], []>} : vector<8x128xf32>, vector<128x128xf32>, vector<8x128xf32> -> vector<8x128xf32>
    %cst_10 = arith.constant dense<0xFF800000> : vector<128xf32>
    %11 = vector.multi_reduction <maximumf>, %10, %cst_10 [0] : vector<8x128xf32> to vector<128xf32>
    %12 = vector.shape_cast %11 : vector<128xf32> to vector<1x128xf32>
    %c1 = arith.constant 1 : index
    %c0_11 = arith.constant 0 : index
    %13 = vector.load %arg3[%c1, %c0_11] : memref<2x128xf32, #tpu.memory_space<vmem>>, vector<1x128xf32>
    %14 = arith.addf %12, %13 : vector<1x128xf32>
    %15 = vector.shape_cast %14 : vector<1x128xf32> to vector<1x128xf32>
    %16 = vector.broadcast %15 : vector<1x128xf32> to vector<2x128xf32>
    %c0_12 = arith.constant 0 : index
    %c0_13 = arith.constant 0 : index
    %c0_14 = arith.constant 0 : index
    %17 = vector.load %arg5[%c0_12, %c0_13, %c0_14] : memref<1x2x128xf32, #tpu.memory_space<vmem>>, vector<1x2x128xf32>
    %18 = vector.shape_cast %17 : vector<1x2x128xf32> to vector<2x128xf32>
    %19 = vector.shape_cast %16 : vector<2x128xf32> to vector<1x2x128xf32>
    tpu.vector_store %arg5[%c0_12, %c0_13, %c0_14], %19 {strides = array<i32>} : memref<1x2x128xf32, #tpu.memory_space<vmem>>, vector<1x2x128xf32>,
    return
  }
  func.func @transform_0(%arg0: i32) -> (i32, i32, i32) {
    %c0_i32 = arith.constant 0 : i32
    %c0_i32_0 = arith.constant 0 : i32
    %c0_i32_1 = arith.constant 0 : i32
    return %arg0, %c0_i32, %c0_i32_0 : i32, i32, i32
  }
  func.func @transform_1(%arg0: i32) -> (i32, i32) {
    %c0_i32 = arith.constant 0 : i32
    %c0_i32_0 = arith.constant 0 : i32
    %c0_i32_1 = arith.constant 0 : i32
    return %c0_i32, %c0_i32_0 : i32, i32
  }
  func.func @transform_2(%arg0: i32) -> (i32, i32) {
    %c0_i32 = arith.constant 0 : i32
    %c0_i32_0 = arith.constant 0 : i32
    %c0_i32_1 = arith.constant 0 : i32
    return %c0_i32, %c0_i32_0 : i32, i32
  }
  func.func @transform_3(%arg0: i32) -> (i32, i32) {
    %c0_i32 = arith.constant 0 : i32
    %c0_i32_0 = arith.constant 0 : i32
    %c0_i32_1 = arith.constant 0 : i32
    return %c0_i32, %c0_i32_0 : i32, i32
  }
  func.func @transform_4(%arg0: i32) -> (i32, i32, i32) {
    %c0_i32 = arith.constant 0 : i32
    %c0_i32_0 = arith.constant 0 : i32
    %c0_i32_1 = arith.constant 0 : i32
    return %arg0, %c0_i32, %c0_i32_0 : i32, i32, i32
  }
}

</mosaic_0001>

<llo_original>
// kernel: tpu_custom_call.1
$region0: #{tpu_custom_call.1}
  #allocation0 [shape = 'u32[]', space=smem, size = 0x4, offset = 0x4, fixed_abs, tag = 'smem constant byte address 0x4 - core index']
  #allocation1 [shape = 'u32[144,128]{1,0:T(1,128)}', space=vmem, size = 0x12000, scoped, tag = 'internal scratch']
  %s0 = inlined_call_operand.hbm [shape: f32[4,8,1024], index: 0, kind: input, shape index: {}]
  %s1 = inlined_call_operand.hbm [shape: f32[1024,128], index: 1, kind: input, shape index: {}]
  %s2 = inlined_call_operand.vmem [shape: f32[2,128], index: 2, kind: input, shape index: {}]
  %s3 = inlined_call_operand.hbm [shape: f32[128,128], index: 3, kind: input, shape index: {}]
  %s4 = inlined_call_operand.hbm [shape: f32[4,2,128], index: 4, kind: output, shape index: {}]
  %s5 = sld [smem:[#allocation0]]
  $region61: #{tpu_custom_call.1} parent=0
    _
  %s7 = ssub.s32 1, %s5
  %s8 = scalar_select 0, %s7, %s5
  $region1: #{tpu_custom_call.1} parent=0
    #allocation2 [shape = 'u8[65536]{0}', space=vmem, size = 0x10000, scoped, tag = 'input window, operand 0']
    #allocation3 [shape = 's32[2]{0}', space=sflag, size = 0x8, scoped, tag = 'scoped memory for tpu_custom_call.1']
    #allocation4 [shape = 's32[2]{0}', space=sflag, size = 0x8, scoped, tag = 'scoped memory for tpu_custom_call.1']
    #allocation5 [shape = 'u8[524288]{0}', space=vmem, size = 0x80000, scoped, tag = 'input window, operand 1, single buffered']
    #allocation6 [shape = 's32[1]{0}', space=sflag, size = 0x4, scoped, tag = 'scoped memory for tpu_custom_call.1']
    #allocation7 [shape = 'u8[65536]{0}', space=vmem, size = 0x10000, scoped, tag = 'input window, operand 3, single buffered']
    #allocation8 [shape = 'u8[2048]{0}', space=vmem, size = 0x800, scoped, tag = 'output window, operand 0']
    %9 = vsyncpa [#allocation3], 0
    %s10 = scalar_lea.sflag [#allocation3], 1
    %11 = vsyncpa %s10, 0
    %12 = vsyncpa [#allocation6], 0
    %13 = vsyncpa [#allocation4], 0
    %s14 = scalar_lea.sflag [#allocation4], 1
    %15 = vsyncpa %s14, 0
    loop: start=0, step=1, limit=6
    $region2: #{tpu_custom_call.1} parent=1 // loop_pre_header
      _
    $region3: #{tpu_custom_call.1} parent=1 // loop_header
      %s17 = sphi 0, %s21
      %p18 = scmp.ge.s32.totalorder %s17, 6
      %s27 = sphi 0, %s29
      %s30 = sphi 0, %s27
      %s31 = sphi 0, %s30
      %s47 = sphi 0, %s31
      %s51 = sphi 0, %s51
      %s53 = sphi 0, %s51
      %s54 = sphi 0, %s53
      %s68 = sphi 0, %s54
      %s72 = sphi 0, %s72
      %s74 = sphi 0, %s72
      %s75 = sphi 0, %s74
      %s89 = sphi 0, %s75
      %s93 = sphi 0, %s93
      %s95 = sphi 0, %s93
      %s96 = sphi 0, %s95
      %s110 = sphi 0, %s96
      %s116 = sphi 0, %s118
      %s119 = sphi 0, %s116
      %s120 = sphi 0, %s119
      %s136 = sphi 0, %s120
    $region4: #{tpu_custom_call.1} parent=1 // loop_header_branch
      %20 = sbr.rel (%p18) target = $region8
    $region5: #{tpu_custom_call.1} parent=1 // loop_body
      %s22 = ssub.s32 %s17, 1
      %s23 = ssub.s32 %s17, 2
      %s24 = sadd.s32 %s17, 1
      %s25 = ssub.s32 %s17, %s24
      %p26 = scmp.eq.s32.totalorder %s25, 0
      %s28 = sadd.s32 %s27, 1
      %s29 = scalar_select %p26, %s27, %s28
      %p32 = pneg %p26
      %p33 = scmp.eq.s32.totalorder %s17, 3
      %p34 = por %p32, %p33
      %p35 = scmp.ne.s32.totalorder %s27, %s30
      %p36 = scmp.eq.s32.totalorder %s17, 0
      %p37 = por %p35, %p36
      %p38 = scmp.ne.s32.totalorder %s27, %s30
      %p39 = scmp.eq.s32.totalorder %s22, 3
      %p40 = por %p38, %p39
      %p41 = scmp.ne.s32.totalorder %s30, %s31
      %p42 = scmp.eq.s32.totalorder %s22, 0
      %p43 = por %p41, %p42
      %p44 = scmp.ne.s32.totalorder %s30, %s31
      %p45 = scmp.eq.s32.totalorder %s23, 3
      %p46 = por %p44, %p45
      %p48 = scmp.ne.s32.totalorder %s31, %s47
      %p49 = scmp.eq.s32.totalorder %s23, 0
      %p50 = por %p48, %p49
      %s52 = sadd.s32 %s51, 1
      %p55 = scmp.eq.s32.totalorder %s17, 3
      %p56 = scmp.ne.s32.totalorder %s51, %s53
      %p57 = scmp.eq.s32.totalorder %s17, 0
      %p58 = por %p56, %p57
      %p59 = scmp.ne.s32.totalorder %s51, %s53
      %p60 = scmp.eq.s32.totalorder %s22, 3
      %p61 = por %p59, %p60
      %p62 = scmp.ne.s32.totalorder %s53, %s54
      %p63 = scmp.eq.s32.totalorder %s22, 0
      %p64 = por %p62, %p63
      %p65 = scmp.ne.s32.totalorder %s53, %s54
      %p66 = scmp.eq.s32.totalorder %s23, 3
      %p67 = por %p65, %p66
      %p69 = scmp.ne.s32.totalorder %s54, %s68
      %p70 = scmp.eq.s32.totalorder %s23, 0
      %p71 = por %p69, %p70
      %s73 = sadd.s32 %s72, 1
      %p76 = scmp.eq.s32.totalorder %s17, 3
      %p77 = scmp.ne.s32.totalorder %s72, %s74
      %p78 = scmp.eq.s32.totalorder %s17, 0
      %p79 = por %p77, %p78
      %p80 = scmp.ne.s32.totalorder %s72, %s74
      %p81 = scmp.eq.s32.totalorder %s22, 3
      %p82 = por %p80, %p81
      %p83 = scmp.ne.s32.totalorder %s74, %s75
      %p84 = scmp.eq.s32.totalorder %s22, 0
      %p85 = por %p83, %p84
      %p86 = scmp.ne.s32.totalorder %s74, %s75
      %p87 = scmp.eq.s32.totalorder %s23, 3
      %p88 = por %p86, %p87
      %p90 = scmp.ne.s32.totalorder %s75, %s89
      %p91 = scmp.eq.s32.totalorder %s23, 0
      %p92 = por %p90, %p91
      %s94 = sadd.s32 %s93, 1
      %p97 = scmp.eq.s32.totalorder %s17, 3
      %p98 = scmp.ne.s32.totalorder %s93, %s95
      %p99 = scmp.eq.s32.totalorder %s17, 0
      %p100 = por %p98, %p99
      %p101 = scmp.ne.s32.totalorder %s93, %s95
      %p102 = scmp.eq.s32.totalorder %s22, 3
      %p103 = por %p101, %p102
      %p104 = scmp.ne.s32.totalorder %s95, %s96
      %p105 = scmp.eq.s32.totalorder %s22, 0
      %p106 = por %p104, %p105
      %p107 = scmp.ne.s32.totalorder %s95, %s96
      %p108 = scmp.eq.s32.totalorder %s23, 3
      %p109 = por %p107, %p108
      %p111 = scmp.ne.s32.totalorder %s96, %s110
      %p112 = scmp.eq.s32.totalorder %s23, 0
      %p113 = por %p111, %p112
      %s114 = ssub.s32 %s17, %s24
      %p115 = scmp.eq.s32.totalorder %s114, 0
      %s117 = sadd.s32 %s116, 1
      %s118 = scalar_select %p115, %s116, %s117
      %p121 = pneg %p115
      %p122 = scmp.eq.s32.totalorder %s17, 3
      %p123 = por %p121, %p122
      %p124 = scmp.ne.s32.totalorder %s116, %s119
      %p125 = scmp.eq.s32.totalorder %s17, 0
      %p126 = por %p124, %p125
      %p127 = scmp.ne.s32.totalorder %s116, %s119
      %p128 = scmp.eq.s32.totalorder %s22, 3
      %p129 = por %p127, %p128
      %p130 = scmp.ne.s32.totalorder %s119, %s120
      %p131 = scmp.eq.s32.totalorder %s22, 0
      %p132 = por %p130, %p131
      %p133 = scmp.ne.s32.totalorder %s119, %s120
      %p134 = scmp.eq.s32.totalorder %s23, 3
      %p135 = por %p133, %p134
      %p137 = scmp.ne.s32.totalorder %s120, %s136
      %p138 = scmp.eq.s32.totalorder %s23, 0
      %p139 = por %p137, %p138
      %p140 = scmp.le.s32.totalorder 1, %s17
      %p141 = scmp.lt.s32.totalorder %s17, 5
      %p142 = pnand %p140, %p141
      %p143 = pneg %p142
      // Predicated region
      $region9: #{tpu_custom_call.1} parent=5 // pred_check
        _
      $region10: #{tpu_custom_call.1} parent=5 // pred_check_branch
        %145 = sbr.rel (%p142) target = $region12
      $region11: #{tpu_custom_call.1} parent=5 // pred_region
        %s146 = ssub.s32 %s17, 1
        // Predicated region
        $region13: #{tpu_custom_call.1} parent=11 // pred_check
          %p147 = pneg %p64
        $region14: #{tpu_custom_call.1} parent=11 // pred_check_branch
          %149 = sbr.rel (%p147) target = $region16
        $region15: #{tpu_custom_call.1} parent=11 // pred_region
          %s151 = ssub.s32 16384, 16384
          %152 = vsyncadd [#allocation6], %s151
          %s153 = sshll.u32 [#allocation5], 4
          %s154 = int_to_ptr.vmem [resolvable:$true] %s153
          %159 = dma.hbm_to_vmem [thread:$0]  %s1, 16384, %s154, [#allocation6], 128, 128, 8
        $region16: #{tpu_custom_call.1} parent=11 // pred_fallthru
          _
        // Predicated region
        $region17: #{tpu_custom_call.1} parent=11 // pred_check
          %p160 = pneg %p85
        $region18: #{tpu_custom_call.1} parent=11 // pred_check_branch
          %162 = sbr.rel (%p160) target = $region20
        $region19: #{tpu_custom_call.1} parent=11 // pred_region
          _
        $region20: #{tpu_custom_call.1} parent=11 // pred_fallthru
          _
        // Predicated region
        $region21: #{tpu_custom_call.1} parent=11 // pred_check
          %p163 = pneg %p106
        $region22: #{tpu_custom_call.1} parent=11 // pred_check_branch
          %165 = sbr.rel (%p163) target = $region24
        $region23: #{tpu_custom_call.1} parent=11 // pred_region
          %s167 = ssub.s32 2048, 2048
          %168 = vsyncadd [#allocation6], %s167
          %s169 = sshll.u32 [#allocation7], 4
          %s170 = int_to_ptr.vmem [resolvable:$true] %s169
          %175 = dma.hbm_to_vmem [thread:$0]  %s3, 2048, %s170, [#allocation6], 128, 128, 8
        $region24: #{tpu_custom_call.1} parent=11 // pred_fallthru
          _
      $region12: #{tpu_custom_call.1} parent=5 // pred_fallthru
        _
      %p176 = scmp.lt.s32.totalorder %s17, 4
      // Predicated region
      $region25: #{tpu_custom_call.1} parent=5 // pred_check
        %p177 = pneg %p176
      $region26: #{tpu_custom_call.1} parent=5 // pred_check_branch
        %179 = sbr.rel (%p177) target = $region28
      $region27: #{tpu_custom_call.1} parent=5 // pred_region
        // Predicated region
        $region29: #{tpu_custom_call.1} parent=27 // pred_check
          %p180 = pneg %p37
        $region30: #{tpu_custom_call.1} parent=27 // pred_check_branch
          %182 = sbr.rel (%p180) target = $region32
        $region31: #{tpu_custom_call.1} parent=27 // pred_region
          %s183 = sand.u32 %s27, 1
          %s184 = scalar_lea.sflag [#allocation3], %s183
          %s185 = sand.u32 %s27, 1
          %s186 = smul.addr %s185, 64
          %s187 = scalar_lea.vmem [#allocation2], %s186
          %s189 = ssub.s32 1024, 1024
          %190 = vsyncadd %s184, %s189
          %s191 = smul.addr %s17, 8
          %s192 = smul.addr %s191, 128
          %s193 = scalar_lea.hbm %s0, %s192
          %s195 = sshll.u32 %s187, 4
          %s196 = int_to_ptr.vmem [resolvable:$true] %s195
          %198 = dma.hbm_to_vmem [thread:$0]  %s193, 1024, %s196, %s184
        $region32: #{tpu_custom_call.1} parent=27 // pred_fallthru
          _
      $region28: #{tpu_custom_call.1} parent=5 // pred_fallthru
        _
      %p199 = scmp.le.s32.totalorder 1, %s17
      %p200 = scmp.lt.s32.totalorder %s17, 5
      %p201 = pnand %p199, %p200
      %p202 = pneg %p201
      // Predicated region
      $region33: #{tpu_custom_call.1} parent=5 // pred_check
        _
      $region34: #{tpu_custom_call.1} parent=5 // pred_check_branch
        %204 = sbr.rel (%p201) target = $region36
      $region35: #{tpu_custom_call.1} parent=5 // pred_region
        %s205 = ssub.s32 %s17, 1
        %s206 = sand.u32 %s30, 1
        %s207 = scalar_lea.sflag [#allocation3], %s206
        %s208 = sand.u32 %s30, 1
        %s209 = smul.addr %s208, 64
        %s210 = scalar_lea.vmem [#allocation2], %s209
        // Predicated region
        $region37: #{tpu_custom_call.1} parent=35 // pred_check
          %p211 = pneg %p43
        $region38: #{tpu_custom_call.1} parent=35 // pred_check_branch
          %213 = sbr.rel (%p211) target = $region40
        $region39: #{tpu_custom_call.1} parent=35 // pred_region
          %214 = dma.done %s207, 1024
        $region40: #{tpu_custom_call.1} parent=35 // pred_fallthru
          _
        // Predicated region
        $region41: #{tpu_custom_call.1} parent=35 // pred_check
          %p215 = pneg %p64
        $region42: #{tpu_custom_call.1} parent=35 // pred_check_branch
          %217 = sbr.rel (%p215) target = $region44
        $region43: #{tpu_custom_call.1} parent=35 // pred_region
          %218 = dma.done [#allocation6], 16384
        $region44: #{tpu_custom_call.1} parent=35 // pred_fallthru
          _
        // Predicated region
        $region45: #{tpu_custom_call.1} parent=35 // pred_check
          %p219 = pneg %p106
        $region46: #{tpu_custom_call.1} parent=35 // pred_check_branch
          %221 = sbr.rel (%p219) target = $region48
        $region47: #{tpu_custom_call.1} parent=35 // pred_region
          %222 = dma.done [#allocation6], 2048
        $region48: #{tpu_custom_call.1} parent=35 // pred_fallthru
          _
        %s223 = sand.u32 %s30, 1
        %s224 = scalar_lea.sflag [#allocation3], %s223
        %s225 = sand.u32 %s30, 1
        %s226 = smul.addr %s225, 64
        %s227 = scalar_lea.vmem [#allocation2], %s226
        %p228 = pneg %p43
        %p229 = pneg %p40
        %p230 = pneg %p64
        %p231 = pneg %p61
        %p232 = pneg %p85
        %p233 = pneg %p82
        %p234 = pneg %p106
        %p235 = pneg %p103
        %p236 = pneg %p132
        %p237 = pneg %p129
        %s238 = sand.u32 %s119, 1
        %s239 = scalar_lea.sflag [#allocation4], %s238
        %s240 = sand.u32 %s119, 1
        %s241 = smul.addr %s240, 2
        %s242 = scalar_lea.vmem [#allocation8], %s241
        %v243 = vld [vmem:[%s210] sm:$0xff]
        %v244 = vld [vmem:[%s210 + $0x8] sm:$0xff]
        %v245 = vld [vmem:[%s210 + $0x10] sm:$0xff]
        %v246 = vld [vmem:[%s210 + $0x18] sm:$0xff]
        %v247 = vld [vmem:[%s210 + $0x20] sm:$0xff]
        %v248 = vld [vmem:[%s210 + $0x28] sm:$0xff]
        %v249 = vld [vmem:[%s210 + $0x30] sm:$0xff]
        %v250 = vld [vmem:[%s210 + $0x38] sm:$0xff]
        %v251 = vld [vmem:[#allocation5] sm:$0xff]
        %v252 = vld [vmem:[#allocation5 + $0x8] sm:$0xff]
        %v253 = vld [vmem:[#allocation5 + $0x10] sm:$0xff]
        %v254 = vld [vmem:[#allocation5 + $0x18] sm:$0xff]
        %v255 = vld [vmem:[#allocation5 + $0x20] sm:$0xff]
        %v256 = vld [vmem:[#allocation5 + $0x28] sm:$0xff]
        %v257 = vld [vmem:[#allocation5 + $0x30] sm:$0xff]
        %v258 = vld [vmem:[#allocation5 + $0x38] sm:$0xff]
        %v259 = vld [vmem:[#allocation5 + $0x40] sm:$0xff]
        %v260 = vld [vmem:[#allocation5 + $0x48] sm:$0xff]
        %v261 = vld [vmem:[#allocation5 + $0x50] sm:$0xff]
        %v262 = vld [vmem:[#allocation5 + $0x58] sm:$0xff]
        %v263 = vld [vmem:[#allocation5 + $0x60] sm:$0xff]
        %v264 = vld [vmem:[#allocation5 + $0x68] sm:$0xff]
        %v265 = vld [vmem:[#allocation5 + $0x70] sm:$0xff]
        %v266 = vld [vmem:[#allocation5 + $0x78] sm:$0xff]
        %v267 = vld [vmem:[#allocation5 + $0x80] sm:$0xff]
        %v268 = vld [vmem:[#allocation5 + $0x88] sm:$0xff]
        %v269 = vld [vmem:[#allocation5 + $0x90] sm:$0xff]
        %v270 = vld [vmem:[#allocation5 + $0x98] sm:$0xff]
        %v271 = vld [vmem:[#allocation5 + $0xa0] sm:$0xff]
        %v272 = vld [vmem:[#allocation5 + $0xa8] sm:$0xff]
        %v273 = vld [vmem:[#allocation5 + $0xb0] sm:$0xff]
        %v274 = vld [vmem:[#allocation5 + $0xb8] sm:$0xff]
        %v275 = vld [vmem:[#allocation5 + $0xc0] sm:$0xff]
        %v276 = vld [vmem:[#allocation5 + $0xc8] sm:$0xff]
        %v277 = vld [vmem:[#allocation5 + $0xd0] sm:$0xff]
        %v278 = vld [vmem:[#allocation5 + $0xd8] sm:$0xff]
        %v279 = vld [vmem:[#allocation5 + $0xe0] sm:$0xff]
        %v280 = vld [vmem:[#allocation5 + $0xe8] sm:$0xff]
        %v281 = vld [vmem:[#allocation5 + $0xf0] sm:$0xff]
        %v282 = vld [vmem:[#allocation5 + $0xf8] sm:$0xff]
        %v283 = vld [vmem:[#allocation5 + $0x100] sm:$0xff]
        %v284 = vld [vmem:[#allocation5 + $0x108] sm:$0xff]
        %v285 = vld [vmem:[#allocation5 + $0x110] sm:$0xff]
        %v286 = vld [vmem:[#allocation5 + $0x118] sm:$0xff]
        %v287 = vld [vmem:[#allocation5 + $0x120] sm:$0xff]
        %v288 = vld [vmem:[#allocation5 + $0x128] sm:$0xff]
        %v289 = vld [vmem:[#allocation5 + $0x130] sm:$0xff]
        %v290 = vld [vmem:[#allocation5 + $0x138] sm:$0xff]
        %v291 = vld [vmem:[#allocation5 + $0x140] sm:$0xff]
        %v292 = vld [vmem:[#allocation5 + $0x148] sm:$0xff]
        %v293 = vld [vmem:[#allocation5 + $0x150] sm:$0xff]
        %v294 = vld [vmem:[#allocation5 + $0x158] sm:$0xff]
        %v295 = vld [vmem:[#allocation5 + $0x160] sm:$0xff]
        %v296 = vld [vmem:[#allocation5 + $0x168] sm:$0xff]
        %v297 = vld [vmem:[#allocation5 + $0x170] sm:$0xff]
        %v298 = vld [vmem:[#allocation5 + $0x178] sm:$0xff]
        %v299 = vld [vmem:[#allocation5 + $0x180] sm:$0xff]
        %v300 = vld [vmem:[#allocation5 + $0x188] sm:$0xff]
        %v301 = vld [vmem:[#allocation5 + $0x190] sm:$0xff]
        %v302 = vld [vmem:[#allocation5 + $0x198] sm:$0xff]
        %v303 = vld [vmem:[#allocation5 + $0x1a0] sm:$0xff]
        %v304 = vld [vmem:[#allocation5 + $0x1a8] sm:$0xff]
        %v305 = vld [vmem:[#allocation5 + $0x1b0] sm:$0xff]
        %v306 = vld [vmem:[#allocation5 + $0x1b8] sm:$0xff]
        %v307 = vld [vmem:[#allocation5 + $0x1c0] sm:$0xff]
        %v308 = vld [vmem:[#allocation5 + $0x1c8] sm:$0xff]
        %v309 = vld [vmem:[#allocation5 + $0x1d0] sm:$0xff]
        %v310 = vld [vmem:[#allocation5 + $0x1d8] sm:$0xff]
        %v311 = vld [vmem:[#allocation5 + $0x1e0] sm:$0xff]
        %v312 = vld [vmem:[#allocation5 + $0x1e8] sm:$0xff]
        %v313 = vld [vmem:[#allocation5 + $0x1f0] sm:$0xff]
        %v314 = vld [vmem:[#allocation5 + $0x1f8] sm:$0xff]
        %v315 = vld [vmem:[#allocation5 + $0x200] sm:$0xff]
        %v316 = vld [vmem:[#allocation5 + $0x208] sm:$0xff]
        %v317 = vld [vmem:[#allocation5 + $0x210] sm:$0xff]
        %v318 = vld [vmem:[#allocation5 + $0x218] sm:$0xff]
        %v319 = vld [vmem:[#allocation5 + $0x220] sm:$0xff]
        %v320 = vld [vmem:[#allocation5 + $0x228] sm:$0xff]
        %v321 = vld [vmem:[#allocation5 + $0x230] sm:$0xff]
        %v322 = vld [vmem:[#allocation5 + $0x238] sm:$0xff]
        %v323 = vld [vmem:[#allocation5 + $0x240] sm:$0xff]
        %v324 = vld [vmem:[#allocation5 + $0x248] sm:$0xff]
        %v325 = vld [vmem:[#allocation5 + $0x250] sm:$0xff]
        %v326 = vld [vmem:[#allocation5 + $0x258] sm:$0xff]
        %v327 = vld [vmem:[#allocation5 + $0x260] sm:$0xff]
        %v328 = vld [vmem:[#allocation5 + $0x268] sm:$0xff]
        %v329 = vld [vmem:[#allocation5 + $0x270] sm:$0xff]
        %v330 = vld [vmem:[#allocation5 + $0x278] sm:$0xff]
        %v331 = vld [vmem:[#allocation5 + $0x280] sm:$0xff]
        %v332 = vld [vmem:[#allocation5 + $0x288] sm:$0xff]
        %v333 = vld [vmem:[#allocation5 + $0x290] sm:$0xff]
        %v334 = vld [vmem:[#allocation5 + $0x298] sm:$0xff]
        %v335 = vld [vmem:[#allocation5 + $0x2a0] sm:$0xff]
        %v336 = vld [vmem:[#allocation5 + $0x2a8] sm:$0xff]
        %v337 = vld [vmem:[#allocation5 + $0x2b0] sm:$0xff]
        %v338 = vld [vmem:[#allocation5 + $0x2b8] sm:$0xff]
        %v339 = vld [vmem:[#allocation5 + $0x2c0] sm:$0xff]
        %v340 = vld [vmem:[#allocation5 + $0x2c8] sm:$0xff]
        %v341 = vld [vmem:[#allocation5 + $0x2d0] sm:$0xff]
        %v342 = vld [vmem:[#allocation5 + $0x2d8] sm:$0xff]
        %v343 = vld [vmem:[#allocation5 + $0x2e0] sm:$0xff]
        %v344 = vld [vmem:[#allocation5 + $0x2e8] sm:$0xff]
        %v345 = vld [vmem:[#allocation5 + $0x2f0] sm:$0xff]
        %v346 = vld [vmem:[#allocation5 + $0x2f8] sm:$0xff]
        %v347 = vld [vmem:[#allocation5 + $0x300] sm:$0xff]
        %v348 = vld [vmem:[#allocation5 + $0x308] sm:$0xff]
        %v349 = vld [vmem:[#allocation5 + $0x310] sm:$0xff]
        %v350 = vld [vmem:[#allocation5 + $0x318] sm:$0xff]
        %v351 = vld [vmem:[#allocation5 + $0x320] sm:$0xff]
        %v352 = vld [vmem:[#allocation5 + $0x328] sm:$0xff]
        %v353 = vld [vmem:[#allocation5 + $0x330] sm:$0xff]
        %v354 = vld [vmem:[#allocation5 + $0x338] sm:$0xff]
        %v355 = vld [vmem:[#allocation5 + $0x340] sm:$0xff]
        %v356 = vld [vmem:[#allocation5 + $0x348] sm:$0xff]
        %v357 = vld [vmem:[#allocation5 + $0x350] sm:$0xff]
        %v358 = vld [vmem:[#allocation5 + $0x358] sm:$0xff]
        %v359 = vld [vmem:[#allocation5 + $0x360] sm:$0xff]
        %v360 = vld [vmem:[#allocation5 + $0x368] sm:$0xff]
        %v361 = vld [vmem:[#allocation5 + $0x370] sm:$0xff]
        %v362 = vld [vmem:[#allocation5 + $0x378] sm:$0xff]
        %v363 = vld [vmem:[#allocation5 + $0x380] sm:$0xff]
        %v364 = vld [vmem:[#allocation5 + $0x388] sm:$0xff]
        %v365 = vld [vmem:[#allocation5 + $0x390] sm:$0xff]
        %v366 = vld [vmem:[#allocation5 + $0x398] sm:$0xff]
        %v367 = vld [vmem:[#allocation5 + $0x3a0] sm:$0xff]
        %v368 = vld [vmem:[#allocation5 + $0x3a8] sm:$0xff]
        %v369 = vld [vmem:[#allocation5 + $0x3b0] sm:$0xff]
        %v370 = vld [vmem:[#allocation5 + $0x3b8] sm:$0xff]
        %v371 = vld [vmem:[#allocation5 + $0x3c0] sm:$0xff]
        %v372 = vld [vmem:[#allocation5 + $0x3c8] sm:$0xff]
        %v373 = vld [vmem:[#allocation5 + $0x3d0] sm:$0xff]
        %v374 = vld [vmem:[#allocation5 + $0x3d8] sm:$0xff]
        %v375 = vld [vmem:[#allocation5 + $0x3e0] sm:$0xff]
        %v376 = vld [vmem:[#allocation5 + $0x3e8] sm:$0xff]
        %v377 = vld [vmem:[#allocation5 + $0x3f0] sm:$0xff]
        %v378 = vld [vmem:[#allocation5 + $0x3f8] sm:$0xff]
        %v379 = vld [vmem:[%s2] sm:$0x1]
        %v380 = vlaneseq
        %v381 = vshrl.u32 %v380, 7
        %v382 = vsub.s32 0, %v381
        %v383 = vrot.slane %v379, %v382
        %384 = vmatprep.subr.mxu0 0.0
        %385 = vmatpush1.msra.mxu0 %v266
        %386 = vmatprep.subr.mxu0 0.0
        %387 = vmatpush1.msra.mxu0 %v265
        %388 = vmatprep.subr.mxu0 0.0
        %389 = vmatpush1.msra.mxu0 %v264
        %390 = vmatprep.subr.mxu0 0.0
        %391 = vmatpush1.msra.mxu0 %v263
        %392 = vmatprep.subr.mxu0 0.0
        %393 = vmatpush1.msra.mxu0 %v262
        %394 = vmatprep.subr.mxu0 0.0
        %395 = vmatpush1.msra.mxu0 %v261
        %396 = vmatprep.subr.mxu0 0.0
        %397 = vmatpush1.msra.mxu0 %v260
        %398 = vmatprep.subr.mxu0 0.0
        %399 = vmatpush1.msra.mxu0 %v259
        %400 = vmatprep.subr.mxu0 0.0
        %401 = vmatpush1.msra.mxu0 %v258
        %402 = vmatprep.subr.mxu0 0.0
        %403 = vmatpush1.msra.mxu0 %v257
        %404 = vmatprep.subr.mxu0 0.0
        %405 = vmatpush1.msra.mxu0 %v256
        %406 = vmatprep.subr.mxu0 0.0
        %407 = vmatpush1.msra.mxu0 %v255
        %408 = vmatprep.subr.mxu0 0.0
        %409 = vmatpush1.msra.mxu0 %v254
        %410 = vmatprep.subr.mxu0 0.0
        %411 = vmatpush1.msra.mxu0 %v253
        %412 = vmatprep.subr.mxu0 0.0
        %413 = vmatpush1.msra.mxu0 %v252
        %414 = vmatprep.subr.mxu0 0.0
        %415 = vmatpush1.msra.mxu0 %v251
        %416 = vmatprep.subr.mxu0 0.0
        %417 = vmatpush2.msra.mxu0 %v282
        %418 = vmatprep.subr.mxu0 0.0
        %419 = vmatpush2.msra.mxu0 %v281
        %420 = vmatprep.subr.mxu0 0.0
        %421 = vmatpush2.msra.mxu0 %v280
        %422 = vmatprep.subr.mxu0 0.0
        %423 = vmatpush2.msra.mxu0 %v279
        %424 = vmatprep.subr.mxu0 0.0
        %425 = vmatpush2.msra.mxu0 %v278
        %426 = vmatprep.subr.mxu0 0.0
        %427 = vmatpush2.msra.mxu0 %v277
        %428 = vmatprep.subr.mxu0 0.0
        %429 = vmatpush2.msra.mxu0 %v276
        %430 = vmatprep.subr.mxu0 0.0
        %431 = vmatpush2.msra.mxu0 %v275
        %432 = vmatprep.subr.mxu0 0.0
        %433 = vmatpush2.msra.mxu0 %v274
        %434 = vmatprep.subr.mxu0 0.0
        %435 = vmatpush2.msra.mxu0 %v273
        %436 = vmatprep.subr.mxu0 0.0
        %437 = vmatpush2.msra.mxu0 %v272
        %438 = vmatprep.subr.mxu0 0.0
        %439 = vmatpush2.msra.mxu0 %v271
        %440 = vmatprep.subr.mxu0 0.0
        %441 = vmatpush2.msra.mxu0 %v270
        %442 = vmatprep.subr.mxu0 0.0
        %443 = vmatpush2.msra.mxu0 %v269
        %444 = vmatprep.subr.mxu0 0.0
        %445 = vmatpush2.msra.mxu0 %v268
        %446 = vmatprep.subr.mxu0 0.0
        %447 = vmatpush2.msra.mxu0 %v267
        %448 = vmatprep.mubr.f32.mxu0 %v244
        %449 = vmatmul.mubr.f32.gmra.mxu0 %v243
        %v450 = vpop.f32.mrf.mxu0
        %v451 = vadd.f32 %v383, %v450
        %v452 = vpop.f32.mrf.mxu0
        %453 = vdwg.mxu0
        %454 = vmatprep.subr.mxu0 0.0
        %455 = vmatpush1.msra.mxu0 %v298
        %456 = vmatprep.subr.mxu0 0.0
        %457 = vmatpush1.msra.mxu0 %v297
        %458 = vmatprep.subr.mxu0 0.0
        %459 = vmatpush1.msra.mxu0 %v296
        %460 = vmatprep.subr.mxu0 0.0
        %461 = vmatpush1.msra.mxu0 %v295
        %462 = vmatprep.subr.mxu0 0.0
        %463 = vmatpush1.msra.mxu0 %v294
        %464 = vmatprep.subr.mxu0 0.0
        %465 = vmatpush1.msra.mxu0 %v293
        %466 = vmatprep.subr.mxu0 0.0
        %467 = vmatpush1.msra.mxu0 %v292
        %468 = vmatprep.subr.mxu0 0.0
        %469 = vmatpush1.msra.mxu0 %v291
        %470 = vmatprep.subr.mxu0 0.0
        %471 = vmatpush1.msra.mxu0 %v290
        %472 = vmatprep.subr.mxu0 0.0
        %473 = vmatpush1.msra.mxu0 %v289
        %474 = vmatprep.subr.mxu0 0.0
        %475 = vmatpush1.msra.mxu0 %v288
        %476 = vmatprep.subr.mxu0 0.0
        %477 = vmatpush1.msra.mxu0 %v287
        %478 = vmatprep.subr.mxu0 0.0
        %479 = vmatpush1.msra.mxu0 %v286
        %480 = vmatprep.subr.mxu0 0.0
        %481 = vmatpush1.msra.mxu0 %v285
        %482 = vmatprep.subr.mxu0 0.0
        %483 = vmatpush1.msra.mxu0 %v284
        %484 = vmatprep.subr.mxu0 0.0
        %485 = vmatpush1.msra.mxu0 %v283
        %486 = vmatprep.subr.mxu0 0.0
        %487 = vmatpush2.msra.mxu0 %v314
        %488 = vmatprep.subr.mxu0 0.0
        %489 = vmatpush2.msra.mxu0 %v313
        %490 = vmatprep.subr.mxu0 0.0
        %491 = vmatpush2.msra.mxu0 %v312
        %492 = vmatprep.subr.mxu0 0.0
        %493 = vmatpush2.msra.mxu0 %v311
        %494 = vmatprep.subr.mxu0 0.0
        %495 = vmatpush2.msra.mxu0 %v310
        %496 = vmatprep.subr.mxu0 0.0
        %497 = vmatpush2.msra.mxu0 %v309
        %498 = vmatprep.subr.mxu0 0.0
        %499 = vmatpush2.msra.mxu0 %v308
        %500 = vmatprep.subr.mxu0 0.0
        %501 = vmatpush2.msra.mxu0 %v307
        %502 = vmatprep.subr.mxu0 0.0
        %503 = vmatpush2.msra.mxu0 %v306
        %504 = vmatprep.subr.mxu0 0.0
        %505 = vmatpush2.msra.mxu0 %v305
        %506 = vmatprep.subr.mxu0 0.0
        %507 = vmatpush2.msra.mxu0 %v304
        %508 = vmatprep.subr.mxu0 0.0
        %509 = vmatpush2.msra.mxu0 %v303
        %510 = vmatprep.subr.mxu0 0.0
        %511 = vmatpush2.msra.mxu0 %v302
        %512 = vmatprep.subr.mxu0 0.0
        %513 = vmatpush2.msra.mxu0 %v301
        %514 = vmatprep.subr.mxu0 0.0
        %515 = vmatpush2.msra.mxu0 %v300
        %516 = vmatprep.subr.mxu0 0.0
        %517 = vmatpush2.msra.mxu0 %v299
        %518 = vmatprep.mubr.f32.mxu0 %v246
        %519 = vmatmul.mubr.f32.gmra.mxu0 %v245
        %v520 = vpop.f32.mrf.mxu0
        %v521 = vadd.f32 %v451, %v520
        %v522 = vpop.f32.mrf.mxu0
        %523 = vdwg.mxu0
        %524 = vmatprep.subr.mxu0 0.0
        %525 = vmatpush1.msra.mxu0 %v330
        %526 = vmatprep.subr.mxu0 0.0
        %527 = vmatpush1.msra.mxu0 %v329
        %528 = vmatprep.subr.mxu0 0.0
        %529 = vmatpush1.msra.mxu0 %v328
        %530 = vmatprep.subr.mxu0 0.0
        %531 = vmatpush1.msra.mxu0 %v327
        %532 = vmatprep.subr.mxu0 0.0
        %533 = vmatpush1.msra.mxu0 %v326
        %534 = vmatprep.subr.mxu0 0.0
        %535 = vmatpush1.msra.mxu0 %v325
        %536 = vmatprep.subr.mxu0 0.0
        %537 = vmatpush1.msra.mxu0 %v324
        %538 = vmatprep.subr.mxu0 0.0
        %539 = vmatpush1.msra.mxu0 %v323
        %540 = vmatprep.subr.mxu0 0.0
        %541 = vmatpush1.msra.mxu0 %v322
        %542 = vmatprep.subr.mxu0 0.0
        %543 = vmatpush1.msra.mxu0 %v321
        %544 = vmatprep.subr.mxu0 0.0
        %545 = vmatpush1.msra.mxu0 %v320
        %546 = vmatprep.subr.mxu0 0.0
        %547 = vmatpush1.msra.mxu0 %v319
        %548 = vmatprep.subr.mxu0 0.0
        %549 = vmatpush1.msra.mxu0 %v318
        %550 = vmatprep.subr.mxu0 0.0
        %551 = vmatpush1.msra.mxu0 %v317
        %552 = vmatprep.subr.mxu0 0.0
        %553 = vmatpush1.msra.mxu0 %v316
        %554 = vmatprep.subr.mxu0 0.0
        %555 = vmatpush1.msra.mxu0 %v315
        %556 = vmatprep.subr.mxu0 0.0
        %557 = vmatpush2.msra.mxu0 %v346
        %558 = vmatprep.subr.mxu0 0.0
        %559 = vmatpush2.msra.mxu0 %v345
        %560 = vmatprep.subr.mxu0 0.0
        %561 = vmatpush2.msra.mxu0 %v344
        %562 = vmatprep.subr.mxu0 0.0
        %563 = vmatpush2.msra.mxu0 %v343
        %564 = vmatprep.subr.mxu0 0.0
        %565 = vmatpush2.msra.mxu0 %v342
        %566 = vmatprep.subr.mxu0 0.0
        %567 = vmatpush2.msra.mxu0 %v341
        %568 = vmatprep.subr.mxu0 0.0
        %569 = vmatpush2.msra.mxu0 %v340
        %570 = vmatprep.subr.mxu0 0.0
        %571 = vmatpush2.msra.mxu0 %v339
        %572 = vmatprep.subr.mxu0 0.0
        %573 = vmatpush2.msra.mxu0 %v338
        %574 = vmatprep.subr.mxu0 0.0
        %575 = vmatpush2.msra.mxu0 %v337
        %576 = vmatprep.subr.mxu0 0.0
        %577 = vmatpush2.msra.mxu0 %v336
        %578 = vmatprep.subr.mxu0 0.0
        %579 = vmatpush2.msra.mxu0 %v335
        %580 = vmatprep.subr.mxu0 0.0
        %581 = vmatpush2.msra.mxu0 %v334
        %582 = vmatprep.subr.mxu0 0.0
        %583 = vmatpush2.msra.mxu0 %v333
        %584 = vmatprep.subr.mxu0 0.0
        %585 = vmatpush2.msra.mxu0 %v332
        %586 = vmatprep.subr.mxu0 0.0
        %587 = vmatpush2.msra.mxu0 %v331
        %588 = vmatprep.mubr.f32.mxu0 %v248
        %589 = vmatmul.mubr.f32.gmra.mxu0 %v247
        %v590 = vpop.f32.mrf.mxu0
        %v591 = vadd.f32 %v521, %v590
        %v592 = vpop.f32.mrf.mxu0
        %593 = vdwg.mxu0
        %594 = vmatprep.subr.mxu0 0.0
        %595 = vmatpush1.msra.mxu0 %v362
        %596 = vmatprep.subr.mxu0 0.0
        %597 = vmatpush1.msra.mxu0 %v361
        %598 = vmatprep.subr.mxu0 0.0
        %599 = vmatpush1.msra.mxu0 %v360
        %600 = vmatprep.subr.mxu0 0.0
        %601 = vmatpush1.msra.mxu0 %v359
        %602 = vmatprep.subr.mxu0 0.0
        %603 = vmatpush1.msra.mxu0 %v358
        %604 = vmatprep.subr.mxu0 0.0
        %605 = vmatpush1.msra.mxu0 %v357
        %606 = vmatprep.subr.mxu0 0.0
        %607 = vmatpush1.msra.mxu0 %v356
        %608 = vmatprep.subr.mxu0 0.0
        %609 = vmatpush1.msra.mxu0 %v355
        %610 = vmatprep.subr.mxu0 0.0
        %611 = vmatpush1.msra.mxu0 %v354
        %612 = vmatprep.subr.mxu0 0.0
        %613 = vmatpush1.msra.mxu0 %v353
        %614 = vmatprep.subr.mxu0 0.0
        %615 = vmatpush1.msra.mxu0 %v352
        %616 = vmatprep.subr.mxu0 0.0
        %617 = vmatpush1.msra.mxu0 %v351
        %618 = vmatprep.subr.mxu0 0.0
        %619 = vmatpush1.msra.mxu0 %v350
        %620 = vmatprep.subr.mxu0 0.0
        %621 = vmatpush1.msra.mxu0 %v349
        %622 = vmatprep.subr.mxu0 0.0
        %623 = vmatpush1.msra.mxu0 %v348
        %624 = vmatprep.subr.mxu0 0.0
        %625 = vmatpush1.msra.mxu0 %v347
        %626 = vmatprep.subr.mxu0 0.0
        %627 = vmatpush2.msra.mxu0 %v378
        %628 = vmatprep.subr.mxu0 0.0
        %629 = vmatpush2.msra.mxu0 %v377
        %630 = vmatprep.subr.mxu0 0.0
        %631 = vmatpush2.msra.mxu0 %v376
        %632 = vmatprep.subr.mxu0 0.0
        %633 = vmatpush2.msra.mxu0 %v375
        %634 = vmatprep.subr.mxu0 0.0
        %635 = vmatpush2.msra.mxu0 %v374
        %636 = vmatprep.subr.mxu0 0.0
        %637 = vmatpush2.msra.mxu0 %v373
        %638 = vmatprep.subr.mxu0 0.0
        %639 = vmatpush2.msra.mxu0 %v372
        %640 = vmatprep.subr.mxu0 0.0
        %641 = vmatpush2.msra.mxu0 %v371
        %642 = vmatprep.subr.mxu0 0.0
        %643 = vmatpush2.msra.mxu0 %v370
        %644 = vmatprep.subr.mxu0 0.0
        %645 = vmatpush2.msra.mxu0 %v369
        %646 = vmatprep.subr.mxu0 0.0
        %647 = vmatpush2.msra.mxu0 %v368
        %648 = vmatprep.subr.mxu0 0.0
        %649 = vmatpush2.msra.mxu0 %v367
        %650 = vmatprep.subr.mxu0 0.0
        %651 = vmatpush2.msra.mxu0 %v366
        %652 = vmatprep.subr.mxu0 0.0
        %653 = vmatpush2.msra.mxu0 %v365
        %654 = vmatprep.subr.mxu0 0.0
        %655 = vmatpush2.msra.mxu0 %v364
        %656 = vmatprep.subr.mxu0 0.0
        %657 = vmatpush2.msra.mxu0 %v363
        %658 = vmatprep.mubr.f32.mxu0 %v250
        %659 = vmatmul.mubr.f32.gmra.mxu0 %v249
        %v660 = vpop.f32.mrf.mxu0
        %v661 = vadd.f32 %v591, %v660
        %v662 = vpop.f32.mrf.mxu0
        %663 = vdwg.mxu0
        %v664 = vmax.f32 %v661, 0.0
        %v665 = vld [vmem:[#allocation7] sm:$0xff]
        %v666 = vld [vmem:[#allocation7 + $0x8] sm:$0xff]
        %v667 = vld [vmem:[#allocation7 + $0x10] sm:$0xff]
        %v668 = vld [vmem:[#allocation7 + $0x18] sm:$0xff]
        %v669 = vld [vmem:[#allocation7 + $0x20] sm:$0xff]
        %v670 = vld [vmem:[#allocation7 + $0x28] sm:$0xff]
        %v671 = vld [vmem:[#allocation7 + $0x30] sm:$0xff]
        %v672 = vld [vmem:[#allocation7 + $0x38] sm:$0xff]
        %v673 = vld [vmem:[#allocation7 + $0x40] sm:$0xff]
        %v674 = vld [vmem:[#allocation7 + $0x48] sm:$0xff]
        %v675 = vld [vmem:[#allocation7 + $0x50] sm:$0xff]
        %v676 = vld [vmem:[#allocation7 + $0x58] sm:$0xff]
        %v677 = vld [vmem:[#allocation7 + $0x60] sm:$0xff]
        %v678 = vld [vmem:[#allocation7 + $0x68] sm:$0xff]
        %v679 = vld [vmem:[#allocation7 + $0x70] sm:$0xff]
        %v680 = vld [vmem:[#allocation7 + $0x78] sm:$0xff]
        %681 = vmatprep.subr.mxu0 0.0
        %682 = vmatpush1.msra.mxu0 %v680
        %683 = vmatprep.subr.mxu0 0.0
        %684 = vmatpush1.msra.mxu0 %v679
        %685 = vmatprep.subr.mxu0 0.0
        %686 = vmatpush1.msra.mxu0 %v678
        %687 = vmatprep.subr.mxu0 0.0
        %688 = vmatpush1.msra.mxu0 %v677
        %689 = vmatprep.subr.mxu0 0.0
        %690 = vmatpush1.msra.mxu0 %v676
        %691 = vmatprep.subr.mxu0 0.0
        %692 = vmatpush1.msra.mxu0 %v675
        %693 = vmatprep.subr.mxu0 0.0
        %694 = vmatpush1.msra.mxu0 %v674
        %695 = vmatprep.subr.mxu0 0.0
        %696 = vmatpush1.msra.mxu0 %v673
        %697 = vmatprep.subr.mxu0 0.0
        %698 = vmatpush1.msra.mxu0 %v672
        %699 = vmatprep.subr.mxu0 0.0
        %700 = vmatpush1.msra.mxu0 %v671
        %701 = vmatprep.subr.mxu0 0.0
        %702 = vmatpush1.msra.mxu0 %v670
        %703 = vmatprep.subr.mxu0 0.0
        %704 = vmatpush1.msra.mxu0 %v669
        %705 = vmatprep.subr.mxu0 0.0
        %706 = vmatpush1.msra.mxu0 %v668
        %707 = vmatprep.subr.mxu0 0.0
        %708 = vmatpush1.msra.mxu0 %v667
        %709 = vmatprep.subr.mxu0 0.0
        %710 = vmatpush1.msra.mxu0 %v666
        %711 = vmatprep.subr.mxu0 0.0
        %712 = vmatpush1.msra.mxu0 %v665
        %713 = vmatprep.subr.mxu0 0.0
        %714 = vmatpush2.msra.mxu0 0.0
        %715 = vmatprep.subr.mxu0 0.0
        %716 = vmatpush2.msra.mxu0 0.0
        %717 = vmatprep.subr.mxu0 0.0
        %718 = vmatpush2.msra.mxu0 0.0
        %719 = vmatprep.subr.mxu0 0.0
        %720 = vmatpush2.msra.mxu0 0.0
        %721 = vmatprep.subr.mxu0 0.0
        %722 = vmatpush2.msra.mxu0 0.0
        %723 = vmatprep.subr.mxu0 0.0
        %724 = vmatpush2.msra.mxu0 0.0
        %725 = vmatprep.subr.mxu0 0.0
        %726 = vmatpush2.msra.mxu0 0.0
        %727 = vmatprep.subr.mxu0 0.0
        %728 = vmatpush2.msra.mxu0 0.0
        %729 = vmatprep.subr.mxu0 0.0
        %730 = vmatpush2.msra.mxu0 0.0
        %731 = vmatprep.subr.mxu0 0.0
        %732 = vmatpush2.msra.mxu0 0.0
        %733 = vmatprep.subr.mxu0 0.0
        %734 = vmatpush2.msra.mxu0 0.0
        %735 = vmatprep.subr.mxu0 0.0
        %736 = vmatpush2.msra.mxu0 0.0
        %737 = vmatprep.subr.mxu0 0.0
        %738 = vmatpush2.msra.mxu0 0.0
        %739 = vmatprep.subr.mxu0 0.0
        %740 = vmatpush2.msra.mxu0 0.0
        %741 = vmatprep.subr.mxu0 0.0
        %742 = vmatpush2.msra.mxu0 0.0
        %743 = vmatprep.subr.mxu0 0.0
        %744 = vmatpush2.msra.mxu0 0.0
        %745 = vmatprep.mubr.f32.mxu0 0.0
        %746 = vmatmul.mubr.f32.gmra.mxu0 %v664
        %v747 = vpop.f32.mrf.mxu0
        %v748 = vadd.f32 0.0, %v747
        %v749 = vpop.f32.mrf.mxu0
        %750 = vdwg.mxu0
        %v751 = vrot.slane %v748, 4
        %v752 = vmax.f32 %v748, %v751
        %v753 = vrot.slane %v752, 2
        %v754 = vmax.f32 %v752, %v753
        %v755 = vrot.slane %v754, 1
        %v756 = vmax.f32 %v754, %v755
        %v757 = vld [vmem:[%s2 + $0x1] sm:$0x1]
        %v758 = vadd.f32 %v756, %v757
        %v759 = vlaneseq
        %v760 = vshrl.u32 %v759, 7
        %v761 = vsub.s32 0, %v760
        %v762 = vrot.slane %v758, %v761
        %763 = vst [vmem:[%s242] sm:$0x3] %v762
        %s764 = sand.u32 %s119, 1
        %s765 = scalar_lea.sflag [#allocation4], %s764
        %s766 = sand.u32 %s119, 1
        %s767 = smul.addr %s766, 2
        %s768 = scalar_lea.vmem [#allocation8], %s767
        // Predicated region
        $region49: #{tpu_custom_call.1} parent=35 // pred_check
          %p769 = pneg %p129
        $region50: #{tpu_custom_call.1} parent=35 // pred_check_branch
          %771 = sbr.rel (%p769) target = $region52
        $region51: #{tpu_custom_call.1} parent=35 // pred_region
          %s773 = ssub.s32 32, 32
          %774 = vsyncadd %s765, %s773
          %s775 = smul.addr %s22, 32
          %s776 = scalar_lea.hbm %s4, %s775
          %s778 = sshll.u32 %s768, 4
          %s779 = int_to_ptr.vmem [resolvable:$true] %s778
          %781 = dma.vmem_to_hbm [thread:$0]  %s779, 32, %s776, %s765
        $region52: #{tpu_custom_call.1} parent=35 // pred_fallthru
          _
      $region36: #{tpu_custom_call.1} parent=5 // pred_fallthru
        _
      %p782 = scmp.le.s32.totalorder 2, %s17
      // Predicated region
      $region53: #{tpu_custom_call.1} parent=5 // pred_check
        %p783 = pneg %p782
      $region54: #{tpu_custom_call.1} parent=5 // pred_check_branch
        %785 = sbr.rel (%p783) target = $region56
      $region55: #{tpu_custom_call.1} parent=5 // pred_region
        %s786 = ssub.s32 %s17, 2
        // Predicated region
        $region57: #{tpu_custom_call.1} parent=55 // pred_check
          %p787 = pneg %p135
        $region58: #{tpu_custom_call.1} parent=55 // pred_check_branch
          %789 = sbr.rel (%p787) target = $region60
        $region59: #{tpu_custom_call.1} parent=55 // pred_region
          %s790 = sand.u32 %s120, 1
          %s791 = scalar_lea.sflag [#allocation4], %s790
          %s792 = sand.u32 %s120, 1
          %s793 = smul.addr %s792, 2
          %s794 = scalar_lea.vmem [#allocation8], %s793
          %795 = dma.done %s791, 32
        $region60: #{tpu_custom_call.1} parent=55 // pred_fallthru
          _
      $region56: #{tpu_custom_call.1} parent=5 // pred_fallthru
        _
    $region6: #{tpu_custom_call.1} parent=1 // loop_footer
      %s21 = sadd.s32 1, %s17
    $region7: #{tpu_custom_call.1} parent=1 // loop_footer_branch
      %16 = sbr.rel target = $region3
    $region8: #{tpu_custom_call.1} parent=1 // loop_exit
      _
    %796 = vsyncpa [#allocation3], 1
    %s797 = scalar_lea.sflag [#allocation3], 1
    %798 = vsyncpa %s797, 1
    %799 = vsyncpa [#allocation6], 1
    %800 = vsyncpa [#allocation4], 1
    %s801 = scalar_lea.sflag [#allocation4], 1
    %802 = vsyncpa %s801, 1

</llo_original>
